<compile_context>
chip_gen: v7x
topology: tpu7x:2x2x1
jax: 0.10.0
libtpu: 0.0.40
codegen_flags: <defaults>
</compile_context>

<pallas_src>
import numpy as np
import jax
import jax.numpy as jnp
from jax.experimental import pallas as pl
from jax.experimental.pallas import tpu as pltpu

EMB_DIM = 16                    # embedding_dim
N_FIELDS = 3                    # active fields ('brand' has dim 0 -> dropped)
MLP_IN = EMB_DIM * N_FIELDS     # 48
X_ROWS = MLP_IN + 1             # 48 embedding rows + 1 price row
H1, H2 = 64, 32


def deepfm_kernel(bias_ref, x_ref, w1_ref, b1_ref, w2_ref, b2_ref, w3_ref,
                  out_ref):
    """One batch tile, batch on lanes.

    bias_ref : SMEM [1, 1]   (fm_bias + b3 folded)
    x_ref    : [49, TB] bf16 (rows 0..47 = concat embeddings, row 48 = price)
    w1_ref   : [64, 48] bf16 ; b1_ref : [64, 1] f32
    w2_ref   : [32, 64] f32  ; b2_ref : [32, 1] f32
    w3_ref   : [32, 1]  f32  (final Linear(32,1) weight as a column)
    out_ref  : [1, TB] f32   (lane-dense output row)
    """
    x = x_ref[...]                                   # [49, TB] bf16
    e_bf = x[:MLP_IN, :]                             # [48, TB] bf16
    price = x[MLP_IN:MLP_IN + 1, :].astype(jnp.float32)   # [1, TB]

    # ---- FM pairwise interaction (VPU, f32 upcast: v5e has no bf16 VPU) ----
    e = e_bf.astype(jnp.float32)                     # [48, TB]
    e1 = e[0 * EMB_DIM:1 * EMB_DIM, :]
    e2 = e[1 * EMB_DIM:2 * EMB_DIM, :]
    e3 = e[2 * EMB_DIM:3 * EMB_DIM, :]
    fm = e1 * e2 + e1 * e3 + e2 * e3                 # [16, TB]
    fm_sum = jnp.sum(fm, axis=0, keepdims=True)      # [1, TB]  (XLU reduce)

    # ---- MLP: Linear(48,64)+ReLU -> Linear(64,32)+ReLU -> Linear(32,1) ----
    # Layer 1: bf16 MXU matmul, f32 accumulation; N = TB (lane-dense).
    h1 = jnp.dot(w1_ref[...], e_bf,
                 preferred_element_type=jnp.float32) + b1_ref[...]   # [64, TB]
    h1 = jnp.maximum(h1, 0.0)
    # Layer 2: tiny f32 matmul.
    h2 = jnp.dot(w2_ref[...], h1,
                 preferred_element_type=jnp.float32) + b2_ref[...]   # [32, TB]
    h2 = jnp.maximum(h2, 0.0)
    # Layer 3 (out_features=1): VPU multiply + sublane reduce instead of an
    # N=1 (here M=1) MXU pass.
    deep = jnp.sum(h2 * w3_ref[...], axis=0, keepdims=True)          # [1, TB]

    out_ref[...] = bias_ref[0, 0] + fm_sum + deep + price


def deepfm_forward(params, x_cat, price, *, tb=128):
    """Embedding gathers + slab packing in plain JAX, then one pallas_call.

    For production-sized batches sweep tb up to 1024-4096 (block VMEM is only
    ~TB*98 B per buffer, safe on v5e/v6e/v7x scoped limits); the pipeline can
    also be deepened with pipeline_mode=pl.Buffered(3) on the slab spec if the
    trace shows exposed DMA.
    """
    emb_list = [params["emb"][f][x_cat[i]] for i, f in enumerate(params["fields"])]
    e_all = jnp.concatenate(
        emb_list + [price.reshape(-1, 1)], axis=-1).astype(jnp.float32)  # [B, 49]
    B = e_all.shape[0]
    b_pad = tb * pl.cdiv(B, tb)
    if b_pad != B:                     # ragged last tile -> zero-pad, slice after
        e_all = jnp.pad(e_all, ((0, b_pad - B), (0, 0)))

    # Lane-dense, batch-on-lanes slab (layout plumbing only).
    x_slab = e_all.astype(jnp.bfloat16).T            # [49, b_pad] bf16

    w1 = params["w1"].astype(jnp.bfloat16)           # [64, 48]
    b1 = params["b1"].reshape(-1, 1).astype(jnp.float32)   # [64, 1]
    w2 = params["w2"].astype(jnp.float32)            # [32, 64]
    b2 = params["b2"].reshape(-1, 1).astype(jnp.float32)   # [32, 1]
    w3 = params["w3"].reshape(-1, 1).astype(jnp.float32)   # [32, 1]
    bias_out = (params["fm_bias"] + params["b3"]).reshape(1, 1).astype(jnp.float32)

    grid = (b_pad // tb,)
    out = pl.pallas_call(
        deepfm_kernel,
        grid=grid,
        in_specs=[
            pl.BlockSpec(memory_space=pltpu.MemorySpace.SMEM),      # folded bias
            pl.BlockSpec((X_ROWS, tb), lambda i: (0, i)),           # x slab (streamed)
            pl.BlockSpec((H1, MLP_IN), lambda i: (0, 0)),           # w1 (resident)
            pl.BlockSpec((H1, 1), lambda i: (0, 0)),                # b1
            pl.BlockSpec((H2, H1), lambda i: (0, 0)),               # w2
            pl.BlockSpec((H2, 1), lambda i: (0, 0)),                # b2
            pl.BlockSpec((H2, 1), lambda i: (0, 0)),                # w3
        ],
        out_specs=pl.BlockSpec((1, tb), lambda i: (0, i)),
        out_shape=jax.ShapeDtypeStruct((1, b_pad), jnp.float32),
        compiler_params=pltpu.CompilerParams(
            dimension_semantics=("parallel",)),      # batch tiles split across TCs (v7x)
    )(bias_out, x_slab, w1, b1, w2, b2, w3)

    return out[0, :B]                  # .squeeze(1) of the torch module


def deepfm_reference(params, x_cat, price):
    """Pure-JAX f32 reference mirroring the torch forward exactly."""
    emb_list = [params["emb"][f][x_cat[i]] for i, f in enumerate(params["fields"])]
    fm = sum(e1 * e2
             for i, e1 in enumerate(emb_list)
             for j, e2 in enumerate(emb_list) if i < j)
    x_mlp = jnp.concatenate(emb_list, axis=-1)
    h1 = jnp.maximum(x_mlp @ params["w1"].T + params["b1"], 0.0)
    h2 = jnp.maximum(h1 @ params["w2"].T + params["b2"], 0.0)
    deep = h2 @ params["w3"].T + params["b3"]
    out = (params["fm_bias"] + fm.sum(axis=1, keepdims=True)
           + deep + price[:, None])
    return out[:, 0]


def make_params(key):
    # 'brand' has nunique == 0 in the source data -> no embedding created.
    field_dims = {"user_id": 64, "item_id": 48, "category": 12, "brand": 0}
    fields = [f for f, d in field_dims.items() if d > 0]
    keys = jax.random.split(key, 6)
    emb = {f: 0.1 * jax.random.normal(k, (field_dims[f], EMB_DIM), jnp.float32)
           for f, k in zip(fields, keys[:3])}
    params = {
        "fields": fields,
        "emb": emb,
        "fm_bias": jnp.zeros((1,), jnp.float32),
        # torch nn.Linear layout: weight [out, in], bias [out]
        "w1": 0.1 * jax.random.normal(keys[3], (H1, MLP_IN), jnp.float32),
        "b1": 0.01 * jnp.ones((H1,), jnp.float32),
        "w2": 0.1 * jax.random.normal(keys[4], (H2, H1), jnp.float32),
        "b2": 0.01 * jnp.ones((H2,), jnp.float32),
        "w3": 0.1 * jax.random.normal(keys[5], (1, H2), jnp.float32),
        "b3": jnp.zeros((1,), jnp.float32),
    }
    return params, field_dims


if __name__ == "__main__":
    root = jax.random.PRNGKey(0)
    k_params, k_idx, k_price = jax.random.split(root, 3)
    params, field_dims = make_params(k_params)

    B = 200                               # not a multiple of the 128 tile -> exercises padding
    active_dims = [field_dims[f] for f in params["fields"]]
    idx_keys = jax.random.split(k_idx, len(active_dims))
    x_cat = [jax.random.randint(k, (B,), 0, d, dtype=jnp.int32)
             for k, d in zip(idx_keys, active_dims)]
    x_cat.append(jnp.zeros((B,), dtype=jnp.int32))   # 'brand' column: present but unused
    price = jax.random.normal(k_price, (B,), dtype=jnp.float32)

    out = jax.block_until_ready(deepfm_forward(params, x_cat, price, tb=128))
    ref = jax.block_until_ready(deepfm_reference(params, x_cat, price))

    assert out.shape == (B,)
    # bf16 embedding/price slab + bf16 first matmul -> bf16-appropriate tolerance
    assert np.allclose(np.asarray(out), np.asarray(ref), atol=2e-2, rtol=2e-2)
    print("KERNEL_OK")
</pallas_src>

<mosaic_0001>
module attributes {stable_mosaic.version = 11 : i64} {
  func.func @deepfm_kernel(%arg0: i32, %arg1: memref<1x1xf32, #tpu.memory_space<smem>>, %arg2: memref<49x128xbf16, #tpu.memory_space<vmem>>, %arg3: memref<64x48xbf16, #tpu.memory_space<vmem>>, %arg4: memref<64x1xf32, #tpu.memory_space<vmem>>, %arg5: memref<32x64xf32, #tpu.memory_space<vmem>>, %arg6: memref<32x1xf32, #tpu.memory_space<vmem>>, %arg7: memref<32x1xf32, #tpu.memory_space<vmem>>, %arg8: memref<1x128xf32, #tpu.memory_space<vmem>>) attributes {dimension_semantics = [#tpu.dimension_semantics<parallel>], iteration_bounds = array<i64: 2>, scalar_prefetch = 0 : i64, scratch_operands = 0 : i64, tpu.core_type = #tpu.core_type<tc>, window_params = [{transform_indices = @transform_0, window_bounds = array<i64: 1, 1>}, {transform_indices = @transform_1, window_bounds = array<i64: 49, 128>}, {pipeline_mode = #tpu.pipeline_mode<synchronous>, transform_indices = @transform_2, window_bounds = array<i64: 64, 48>}, {pipeline_mode = #tpu.pipeline_mode<synchronous>, transform_indices = @transform_3, window_bounds = array<i64: 64, 1>}, {pipeline_mode = #tpu.pipeline_mode<synchronous>, transform_indices = @transform_4, window_bounds = array<i64: 32, 64>}, {pipeline_mode = #tpu.pipeline_mode<synchronous>, transform_indices = @transform_5, window_bounds = array<i64: 32, 1>}, {pipeline_mode = #tpu.pipeline_mode<synchronous>, transform_indices = @transform_6, window_bounds = array<i64: 32, 1>}, {transform_indices = @transform_7, window_bounds = array<i64: 1, 128>}]} {
    %c0 = arith.constant 0 : index
    %c0_0 = arith.constant 0 : index
    %0 = vector.load %arg2[%c0, %c0_0] : memref<49x128xbf16, #tpu.memory_space<vmem>>, vector<49x128xbf16>
    %1 = vector.extract_strided_slice %0 {offsets = [0, 0], sizes = [48, 128], strides = [1, 1]} : vector<49x128xbf16> to vector<48x128xbf16>
    %2 = vector.extract_strided_slice %0 {offsets = [48, 0], sizes = [1, 128], strides = [1, 1]} : vector<49x128xbf16> to vector<1x128xbf16>
    %3 = arith.extf %2 : vector<1x128xbf16> to vector<1x128xf32>
    %4 = arith.extf %1 : vector<48x128xbf16> to vector<48x128xf32>
    %5 = vector.extract_strided_slice %4 {offsets = [0, 0], sizes = [16, 128], strides = [1, 1]} : vector<48x128xf32> to vector<16x128xf32>
    %6 = vector.extract_strided_slice %4 {offsets = [16, 0], sizes = [16, 128], strides = [1, 1]} : vector<48x128xf32> to vector<16x128xf32>
    %7 = vector.extract_strided_slice %4 {offsets = [32, 0], sizes = [16, 128], strides = [1, 1]} : vector<48x128xf32> to vector<16x128xf32>
    %8 = arith.mulf %5, %6 : vector<16x128xf32>
    %9 = arith.mulf %5, %7 : vector<16x128xf32>
    %10 = arith.addf %8, %9 : vector<16x128xf32>
    %11 = arith.mulf %6, %7 : vector<16x128xf32>
    %12 = arith.addf %10, %11 : vector<16x128xf32>
    %cst = arith.constant dense<0.000000e+00> : vector<128xf32>
    %13 = vector.multi_reduction <add>, %12, %cst [0] : vector<16x128xf32> to vector<128xf32>
    %14 = vector.shape_cast %13 : vector<128xf32> to vector<1x128xf32>
    %c0_1 = arith.constant 0 : index
    %c0_2 = arith.constant 0 : index
    %15 = vector.load %arg3[%c0_1, %c0_2] : memref<64x48xbf16, #tpu.memory_space<vmem>>, vector<64x48xbf16>
    %cst_3 = arith.constant dense<0.000000e+00> : vector<64x128xf32>
    %16 = tpu.matmul %15, %1, %cst_3 {dimension_numbers = #tpu.dot_dimension_numbers<[1], [0], [0], [1], [0, 0, 1, 1], [], []>} : vector<64x48xbf16>, vector<48x128xbf16>, vector<64x128xf32> -> vector<64x128xf32>
    %c0_4 = arith.constant 0 : index
    %c0_5 = arith.constant 0 : index
    %17 = vector.load %arg4[%c0_4, %c0_5] : memref<64x1xf32, #tpu.memory_space<vmem>>, vector<64x1xf32>
    %18 = vector.broadcast %17 : vector<64x1xf32> to vector<64x128xf32>
    %19 = arith.addf %16, %18 : vector<64x128xf32>
    %cst_6 = arith.constant 0.000000e+00 : f32
    %20 = vector.broadcast %cst_6 : f32 to vector<64x128xf32>
    %21 = arith.maximumf %19, %20 : vector<64x128xf32>
    %c0_7 = arith.constant 0 : index
    %c0_8 = arith.constant 0 : index
    %22 = vector.load %arg5[%c0_7, %c0_8] : memref<32x64xf32, #tpu.memory_space<vmem>>, vector<32x64xf32>
    %cst_9 = arith.constant dense<0.000000e+00> : vector<32x128xf32>
    %23 = tpu.matmul %22, %21, %cst_9 {dimension_numbers = #tpu.dot_dimension_numbers<[1], [0], [0], [1], [0, 0, 1, 1], [], []>} : vector<32x64xf32>, vector<64x128xf32>, vector<32x128xf32> -> vector<32x128xf32>
    %c0_10 = arith.constant 0 : index
    %c0_11 = arith.constant 0 : index
    %24 = vector.load %arg6[%c0_10, %c0_11] : memref<32x1xf32, #tpu.memory_space<vmem>>, vector<32x1xf32>
    %25 = vector.broadcast %24 : vector<32x1xf32> to vector<32x128xf32>
    %26 = arith.addf %23, %25 : vector<32x128xf32>
    %cst_12 = arith.constant 0.000000e+00 : f32
    %27 = vector.broadcast %cst_12 : f32 to vector<32x128xf32>
    %28 = arith.maximumf %26, %27 : vector<32x128xf32>
    %c0_13 = arith.constant 0 : index
    %c0_14 = arith.constant 0 : index
    %29 = vector.load %arg7[%c0_13, %c0_14] : memref<32x1xf32, #tpu.memory_space<vmem>>, vector<32x1xf32>
    %30 = vector.broadcast %29 : vector<32x1xf32> to vector<32x128xf32>
    %31 = arith.mulf %28, %30 : vector<32x128xf32>
    %cst_15 = arith.constant dense<0.000000e+00> : vector<128xf32>
    %32 = vector.multi_reduction <add>, %31, %cst_15 [0] : vector<32x128xf32> to vector<128xf32>
    %33 = vector.shape_cast %32 : vector<128xf32> to vector<1x128xf32>
    %c0_16 = arith.constant 0 : index
    %c0_17 = arith.constant 0 : index
    %34 = memref.load %arg1[%c0_16, %c0_17] : memref<1x1xf32, #tpu.memory_space<smem>>
    %35 = vector.broadcast %34 : f32 to vector<1x128xf32>
    %36 = arith.addf %35, %14 : vector<1x128xf32>
    %37 = arith.addf %36, %33 : vector<1x128xf32>
    %38 = arith.addf %37, %3 : vector<1x128xf32>
    %c0_18 = arith.constant 0 : index
    %c0_19 = arith.constant 0 : index
    %39 = vector.load %arg8[%c0_18, %c0_19] : memref<1x128xf32, #tpu.memory_space<vmem>>, vector<1x128xf32>
    tpu.vector_store %arg8[%c0_18, %c0_19], %38 {strides = array<i32>} : memref<1x128xf32, #tpu.memory_space<vmem>>, vector<1x128xf32>,
    return
  }
  func.func @transform_0(%arg0: i32) -> (i32, i32) {
    %c0_i32 = arith.constant 0 : i32
    %c0_i32_0 = arith.constant 0 : i32
    %c0_i32_1 = arith.constant 0 : i32
    return %c0_i32, %c0_i32_0 : i32, i32
  }
  func.func @transform_1(%arg0: i32) -> (i32, i32) {
    %c0_i32 = arith.constant 0 : i32
    %c0_i32_0 = arith.constant 0 : i32
    return %c0_i32, %arg0 : i32, i32
  }
  func.func @transform_2(%arg0: i32) -> (i32, i32) {
    %c0_i32 = arith.constant 0 : i32
    %c0_i32_0 = arith.constant 0 : i32
    %c0_i32_1 = arith.constant 0 : i32
    return %c0_i32, %c0_i32_0 : i32, i32
  }
  func.func @transform_3(%arg0: i32) -> (i32, i32) {
    %c0_i32 = arith.constant 0 : i32
    %c0_i32_0 = arith.constant 0 : i32
    %c0_i32_1 = arith.constant 0 : i32
    return %c0_i32, %c0_i32_0 : i32, i32
  }
  func.func @transform_4(%arg0: i32) -> (i32, i32) {
    %c0_i32 = arith.constant 0 : i32
    %c0_i32_0 = arith.constant 0 : i32
    %c0_i32_1 = arith.constant 0 : i32
    return %c0_i32, %c0_i32_0 : i32, i32
  }
  func.func @transform_5(%arg0: i32) -> (i32, i32) {
    %c0_i32 = arith.constant 0 : i32
    %c0_i32_0 = arith.constant 0 : i32
    %c0_i32_1 = arith.constant 0 : i32
    return %c0_i32, %c0_i32_0 : i32, i32
  }
  func.func @transform_6(%arg0: i32) -> (i32, i32) {
    %c0_i32 = arith.constant 0 : i32
    %c0_i32_0 = arith.constant 0 : i32
    %c0_i32_1 = arith.constant 0 : i32
    return %c0_i32, %c0_i32_0 : i32, i32
  }
  func.func @transform_7(%arg0: i32) -> (i32, i32) {
    %c0_i32 = arith.constant 0 : i32
    %c0_i32_0 = arith.constant 0 : i32
    return %c0_i32, %arg0 : i32, i32
  }
}

</mosaic_0001>

<llo_original>
// kernel: tpu_custom_call.1
$region0: #{tpu_custom_call.1}
  #allocation0 [shape = 'u32[]', space=smem, size = 0x4, offset = 0x4, fixed_abs, tag = 'smem constant byte address 0x4 - core index']
  #allocation1 [shape = 'u32[144,128]{1,0:T(1,128)}', space=vmem, size = 0x12000, scoped, tag = 'internal scratch']
  #allocation2 [shape = 'f32[1,1]{1,0:T(1,128)S(6)}', space=smem, size = 0x200, scoped, tag = 'scoped memory for tpu_custom_call.1']
  %s0 = inlined_call_operand.<no memory space> [shape: f32[1,1], index: 0, kind: input, shape index: {}]
  %s1 = inlined_call_operand.vmem [shape: bf16[49,256], index: 1, kind: input, shape index: {}]
  %s2 = inlined_call_operand.vmem [shape: bf16[64,48], index: 2, kind: input, shape index: {}]
  %s3 = inlined_call_operand.vmem [shape: f32[64,1], index: 3, kind: input, shape index: {}]
  %s4 = inlined_call_operand.vmem [shape: f32[32,64], index: 4, kind: input, shape index: {}]
  %s5 = inlined_call_operand.vmem [shape: f32[32,1], index: 5, kind: input, shape index: {}]
  %s6 = inlined_call_operand.vmem [shape: f32[32,1], index: 6, kind: input, shape index: {}]
  %s7 = inlined_call_operand.hbm [shape: f32[1,256], index: 7, kind: output, shape index: {}]
  %s8 = sld [smem:[#allocation0]]
  $region102: #{tpu_custom_call.1} parent=0
    _
  %s10 = ssub.s32 1, %s8
  %s11 = scalar_select 0, %s10, %s8
  %12 = sst [smem:[#allocation2]] %s0
  $region1: #{tpu_custom_call.1} parent=0
    #allocation3 [shape = 'u8[28672]{0}', space=vmem, size = 0x7000, scoped, tag = 'input window, operand 1']
    #allocation4 [shape = 'u8[1024]{0}', space=vmem, size = 0x400, scoped, tag = 'output window, operand 0']
    #allocation5 [shape = 's32[2]{0}', space=sflag, size = 0x8, scoped, tag = 'scoped memory for tpu_custom_call.1']
    %13 = vsyncpa [#allocation5], 0
    %s14 = scalar_lea.sflag [#allocation5], 1
    %15 = vsyncpa %s14, 0
    loop: start=0, step=1, limit=4
    $region2: #{tpu_custom_call.1} parent=1 // loop_pre_header
      _
    $region3: #{tpu_custom_call.1} parent=1 // loop_header
      %s17 = sphi 0, %s21
      %p18 = scmp.ge.s32.totalorder %s17, 4
      %s25 = sphi 0, %s25
      %s27 = sphi 0, %s25
      %s28 = sphi 0, %s27
      %s42 = sphi 0, %s28
      %s48 = sphi 0, %s50
      %s51 = sphi 0, %s48
      %s52 = sphi 0, %s51
      %s68 = sphi 0, %s52
      %s72 = sphi 0, %s72
      %s74 = sphi 0, %s72
      %s75 = sphi 0, %s74
      %s89 = sphi 0, %s75
      %s93 = sphi 0, %s93
      %s95 = sphi 0, %s93
      %s96 = sphi 0, %s95
      %s110 = sphi 0, %s96
      %s114 = sphi 0, %s114
      %s116 = sphi 0, %s114
      %s117 = sphi 0, %s116
      %s131 = sphi 0, %s117
      %s135 = sphi 0, %s135
      %s137 = sphi 0, %s135
      %s138 = sphi 0, %s137
      %s152 = sphi 0, %s138
      %s156 = sphi 0, %s156
      %s158 = sphi 0, %s156
      %s159 = sphi 0, %s158
      %s173 = sphi 0, %s159
      %s179 = sphi 0, %s181
      %s182 = sphi 0, %s179
      %s183 = sphi 0, %s182
      %s199 = sphi 0, %s183
    $region4: #{tpu_custom_call.1} parent=1 // loop_header_branch
      %20 = sbr.rel (%p18) target = $region8
    $region5: #{tpu_custom_call.1} parent=1 // loop_body
      %s22 = ssub.s32 %s17, 1
      %s23 = ssub.s32 %s17, 2
      %s24 = sadd.s32 %s17, 1
      %s26 = sadd.s32 %s25, 1
      %p29 = scmp.eq.s32.totalorder %s17, 1
      %p30 = scmp.ne.s32.totalorder %s25, %s27
      %p31 = scmp.eq.s32.totalorder %s17, 0
      %p32 = por %p30, %p31
      %p33 = scmp.ne.s32.totalorder %s25, %s27
      %p34 = scmp.eq.s32.totalorder %s22, 1
      %p35 = por %p33, %p34
      %p36 = scmp.ne.s32.totalorder %s27, %s28
      %p37 = scmp.eq.s32.totalorder %s22, 0
      %p38 = por %p36, %p37
      %p39 = scmp.ne.s32.totalorder %s27, %s28
      %p40 = scmp.eq.s32.totalorder %s23, 1
      %p41 = por %p39, %p40
      %p43 = scmp.ne.s32.totalorder %s28, %s42
      %p44 = scmp.eq.s32.totalorder %s23, 0
      %p45 = por %p43, %p44
      %s46 = ssub.s32 %s17, %s24
      %p47 = scmp.eq.s32.totalorder %s46, 0
      %s49 = sadd.s32 %s48, 1
      %s50 = scalar_select %p47, %s48, %s49
      %p53 = pneg %p47
      %p54 = scmp.eq.s32.totalorder %s17, 1
      %p55 = por %p53, %p54
      %p56 = scmp.ne.s32.totalorder %s48, %s51
      %p57 = scmp.eq.s32.totalorder %s17, 0
      %p58 = por %p56, %p57
      %p59 = scmp.ne.s32.totalorder %s48, %s51
      %p60 = scmp.eq.s32.totalorder %s22, 1
      %p61 = por %p59, %p60
      %p62 = scmp.ne.s32.totalorder %s51, %s52
      %p63 = scmp.eq.s32.totalorder %s22, 0
      %p64 = por %p62, %p63
      %p65 = scmp.ne.s32.totalorder %s51, %s52
      %p66 = scmp.eq.s32.totalorder %s23, 1
      %p67 = por %p65, %p66
      %p69 = scmp.ne.s32.totalorder %s52, %s68
      %p70 = scmp.eq.s32.totalorder %s23, 0
      %p71 = por %p69, %p70
      %s73 = sadd.s32 %s72, 1
      %p76 = scmp.eq.s32.totalorder %s17, 1
      %p77 = scmp.ne.s32.totalorder %s72, %s74
      %p78 = scmp.eq.s32.totalorder %s17, 0
      %p79 = por %p77, %p78
      %p80 = scmp.ne.s32.totalorder %s72, %s74
      %p81 = scmp.eq.s32.totalorder %s22, 1
      %p82 = por %p80, %p81
      %p83 = scmp.ne.s32.totalorder %s74, %s75
      %p84 = scmp.eq.s32.totalorder %s22, 0
      %p85 = por %p83, %p84
      %p86 = scmp.ne.s32.totalorder %s74, %s75
      %p87 = scmp.eq.s32.totalorder %s23, 1
      %p88 = por %p86, %p87
      %p90 = scmp.ne.s32.totalorder %s75, %s89
      %p91 = scmp.eq.s32.totalorder %s23, 0
      %p92 = por %p90, %p91
      %s94 = sadd.s32 %s93, 1
      %p97 = scmp.eq.s32.totalorder %s17, 1
      %p98 = scmp.ne.s32.totalorder %s93, %s95
      %p99 = scmp.eq.s32.totalorder %s17, 0
      %p100 = por %p98, %p99
      %p101 = scmp.ne.s32.totalorder %s93, %s95
      %p102 = scmp.eq.s32.totalorder %s22, 1
      %p103 = por %p101, %p102
      %p104 = scmp.ne.s32.totalorder %s95, %s96
      %p105 = scmp.eq.s32.totalorder %s22, 0
      %p106 = por %p104, %p105
      %p107 = scmp.ne.s32.totalorder %s95, %s96
      %p108 = scmp.eq.s32.totalorder %s23, 1
      %p109 = por %p107, %p108
      %p111 = scmp.ne.s32.totalorder %s96, %s110
      %p112 = scmp.eq.s32.totalorder %s23, 0
      %p113 = por %p111, %p112
      %s115 = sadd.s32 %s114, 1
      %p118 = scmp.eq.s32.totalorder %s17, 1
      %p119 = scmp.ne.s32.totalorder %s114, %s116
      %p120 = scmp.eq.s32.totalorder %s17, 0
      %p121 = por %p119, %p120
      %p122 = scmp.ne.s32.totalorder %s114, %s116
      %p123 = scmp.eq.s32.totalorder %s22, 1
      %p124 = por %p122, %p123
      %p125 = scmp.ne.s32.totalorder %s116, %s117
      %p126 = scmp.eq.s32.totalorder %s22, 0
      %p127 = por %p125, %p126
      %p128 = scmp.ne.s32.totalorder %s116, %s117
      %p129 = scmp.eq.s32.totalorder %s23, 1
      %p130 = por %p128, %p129
      %p132 = scmp.ne.s32.totalorder %s117, %s131
      %p133 = scmp.eq.s32.totalorder %s23, 0
      %p134 = por %p132, %p133
      %s136 = sadd.s32 %s135, 1
      %p139 = scmp.eq.s32.totalorder %s17, 1
      %p140 = scmp.ne.s32.totalorder %s135, %s137
      %p141 = scmp.eq.s32.totalorder %s17, 0
      %p142 = por %p140, %p141
      %p143 = scmp.ne.s32.totalorder %s135, %s137
      %p144 = scmp.eq.s32.totalorder %s22, 1
      %p145 = por %p143, %p144
      %p146 = scmp.ne.s32.totalorder %s137, %s138
      %p147 = scmp.eq.s32.totalorder %s22, 0
      %p148 = por %p146, %p147
      %p149 = scmp.ne.s32.totalorder %s137, %s138
      %p150 = scmp.eq.s32.totalorder %s23, 1
      %p151 = por %p149, %p150
      %p153 = scmp.ne.s32.totalorder %s138, %s152
      %p154 = scmp.eq.s32.totalorder %s23, 0
      %p155 = por %p153, %p154
      %s157 = sadd.s32 %s156, 1
      %p160 = scmp.eq.s32.totalorder %s17, 1
      %p161 = scmp.ne.s32.totalorder %s156, %s158
      %p162 = scmp.eq.s32.totalorder %s17, 0
      %p163 = por %p161, %p162
      %p164 = scmp.ne.s32.totalorder %s156, %s158
      %p165 = scmp.eq.s32.totalorder %s22, 1
      %p166 = por %p164, %p165
      %p167 = scmp.ne.s32.totalorder %s158, %s159
      %p168 = scmp.eq.s32.totalorder %s22, 0
      %p169 = por %p167, %p168
      %p170 = scmp.ne.s32.totalorder %s158, %s159
      %p171 = scmp.eq.s32.totalorder %s23, 1
      %p172 = por %p170, %p171
      %p174 = scmp.ne.s32.totalorder %s159, %s173
      %p175 = scmp.eq.s32.totalorder %s23, 0
      %p176 = por %p174, %p175
      %s177 = ssub.s32 %s17, %s24
      %p178 = scmp.eq.s32.totalorder %s177, 0
      %s180 = sadd.s32 %s179, 1
      %s181 = scalar_select %p178, %s179, %s180
      %p184 = pneg %p178
      %p185 = scmp.eq.s32.totalorder %s17, 1
      %p186 = por %p184, %p185
      %p187 = scmp.ne.s32.totalorder %s179, %s182
      %p188 = scmp.eq.s32.totalorder %s17, 0
      %p189 = por %p187, %p188
      %p190 = scmp.ne.s32.totalorder %s179, %s182
      %p191 = scmp.eq.s32.totalorder %s22, 1
      %p192 = por %p190, %p191
      %p193 = scmp.ne.s32.totalorder %s182, %s183
      %p194 = scmp.eq.s32.totalorder %s22, 0
      %p195 = por %p193, %p194
      %p196 = scmp.ne.s32.totalorder %s182, %s183
      %p197 = scmp.eq.s32.totalorder %s23, 1
      %p198 = por %p196, %p197
      %p200 = scmp.ne.s32.totalorder %s183, %s199
      %p201 = scmp.eq.s32.totalorder %s23, 0
      %p202 = por %p200, %p201
      %p203 = scmp.le.s32.totalorder 1, %s17
      %p204 = scmp.lt.s32.totalorder %s17, 3
      %p205 = pnand %p203, %p204
      %p206 = pneg %p205
      // Predicated region
      $region9: #{tpu_custom_call.1} parent=5 // pred_check
        _
      $region10: #{tpu_custom_call.1} parent=5 // pred_check_branch
        %208 = sbr.rel (%p205) target = $region12
      $region11: #{tpu_custom_call.1} parent=5 // pred_region
        %s209 = ssub.s32 %s17, 1
        // Predicated region
        $region13: #{tpu_custom_call.1} parent=11 // pred_check
          %p210 = pneg %p38
        $region14: #{tpu_custom_call.1} parent=11 // pred_check_branch
          %212 = sbr.rel (%p210) target = $region16
        $region15: #{tpu_custom_call.1} parent=11 // pred_region
          _
        $region16: #{tpu_custom_call.1} parent=11 // pred_fallthru
          _
        // Predicated region
        $region17: #{tpu_custom_call.1} parent=11 // pred_check
          %p213 = pneg %p85
        $region18: #{tpu_custom_call.1} parent=11 // pred_check_branch
          %215 = sbr.rel (%p213) target = $region20
        $region19: #{tpu_custom_call.1} parent=11 // pred_region
          _
        $region20: #{tpu_custom_call.1} parent=11 // pred_fallthru
          _
        // Predicated region
        $region21: #{tpu_custom_call.1} parent=11 // pred_check
          %p216 = pneg %p106
        $region22: #{tpu_custom_call.1} parent=11 // pred_check_branch
          %218 = sbr.rel (%p216) target = $region24
        $region23: #{tpu_custom_call.1} parent=11 // pred_region
          _
        $region24: #{tpu_custom_call.1} parent=11 // pred_fallthru
          _
        // Predicated region
        $region25: #{tpu_custom_call.1} parent=11 // pred_check
          %p219 = pneg %p127
        $region26: #{tpu_custom_call.1} parent=11 // pred_check_branch
          %221 = sbr.rel (%p219) target = $region28
        $region27: #{tpu_custom_call.1} parent=11 // pred_region
          _
        $region28: #{tpu_custom_call.1} parent=11 // pred_fallthru
          _
        // Predicated region
        $region29: #{tpu_custom_call.1} parent=11 // pred_check
          %p222 = pneg %p148
        $region30: #{tpu_custom_call.1} parent=11 // pred_check_branch
          %224 = sbr.rel (%p222) target = $region32
        $region31: #{tpu_custom_call.1} parent=11 // pred_region
          _
        $region32: #{tpu_custom_call.1} parent=11 // pred_fallthru
          _
        // Predicated region
        $region33: #{tpu_custom_call.1} parent=11 // pred_check
          %p225 = pneg %p169
        $region34: #{tpu_custom_call.1} parent=11 // pred_check_branch
          %227 = sbr.rel (%p225) target = $region36
        $region35: #{tpu_custom_call.1} parent=11 // pred_region
          _
        $region36: #{tpu_custom_call.1} parent=11 // pred_fallthru
          _
      $region12: #{tpu_custom_call.1} parent=5 // pred_fallthru
        _
      %p228 = scmp.lt.s32.totalorder %s17, 2
      // Predicated region
      $region37: #{tpu_custom_call.1} parent=5 // pred_check
        %p229 = pneg %p228
      $region38: #{tpu_custom_call.1} parent=5 // pred_check_branch
        %231 = sbr.rel (%p229) target = $region40
      $region39: #{tpu_custom_call.1} parent=5 // pred_region
        // Predicated region
        $region41: #{tpu_custom_call.1} parent=39 // pred_check
          %p232 = pneg %p58
        $region42: #{tpu_custom_call.1} parent=39 // pred_check_branch
          %234 = sbr.rel (%p232) target = $region44
        $region43: #{tpu_custom_call.1} parent=39 // pred_region
          %s235 = sand.u32 %s48, 1
          %s236 = sand.u32 %s48, 1
          %s237 = smul.addr %s236, 28
          %s238 = scalar_lea.vmem [#allocation3], %s237
          %s239 = smul.addr %s17, 4
          %s240 = scalar_lea.vmem %s1, %s239
          // Predicated region
          $region45: #{tpu_custom_call.1} parent=43 // pred_check
            _
          $region46: #{tpu_custom_call.1} parent=43 // pred_check_branch
            %242 = sbr.rel (0) target = $region48
          $region47: #{tpu_custom_call.1} parent=43 // pred_region
            // Predicated region
            $region49: #{tpu_custom_call.1} parent=47 // pred_check
              _
            $region50: #{tpu_custom_call.1} parent=47 // pred_check_branch
              %244 = sbr.rel target = $region52
            $region51: #{tpu_custom_call.1} parent=47 // pred_region
              // Predicated region
              $region64: #{tpu_custom_call.1} parent=51 // pred_check
                _
              $region65: #{tpu_custom_call.1} parent=51 // pred_check_branch
                %271 = sbr.rel (0) target = $region67
              $region66: #{tpu_custom_call.1} parent=51 // pred_region
                loop: start=0, step=1, limit=1
                $region68: #{tpu_custom_call.1} parent=66 // loop_pre_header
                  _
                $region69: #{tpu_custom_call.1} parent=66 // loop_header
                  %s273 = sphi 0, %s277
                  %p274 = scmp.ge.s32.totalorder %s273, 1
                  %s278 = sphi %s240, %s240
                  %s279 = sphi %s238, %s238
                $region70: #{tpu_custom_call.1} parent=66 // loop_header_branch
                  %276 = sbr.rel (%p274) target = $region74
                $region71: #{tpu_custom_call.1} parent=66 // loop_body
                  _
                $region72: #{tpu_custom_call.1} parent=66 // loop_footer
                  %s277 = sadd.s32 1, %s273
                $region73: #{tpu_custom_call.1} parent=66 // loop_footer_branch
                  %272 = sbr.rel target = $region69
                $region74: #{tpu_custom_call.1} parent=66 // loop_exit
                  _
                loop: start=0, step=1, limit=1
                $region75: #{tpu_custom_call.1} parent=66 // loop_pre_header
                  _
                $region76: #{tpu_custom_call.1} parent=66 // loop_header
                  %s282 = sphi 0, %s286
                  %p283 = scmp.ge.s32.totalorder %s282, 1
                  %s287 = sphi %s240, %s240
                  %s288 = sphi %s238, %s238
                $region77: #{tpu_custom_call.1} parent=66 // loop_header_branch
                  %285 = sbr.rel (%p283) target = $region81
                $region78: #{tpu_custom_call.1} parent=66 // loop_body
                  %v289 = vld [vmem:[%s287] sm:$0xf]
                  %290 = vst [vmem:[%s288] sm:$0xf] %v289
                  %v291 = vld [vmem:[%s287 + $0x8] sm:$0xf]
                  %292 = vst [vmem:[%s288 + $0x4] sm:$0xf] %v291
                  %v293 = vld [vmem:[%s287 + $0x10] sm:$0xf]
                  %294 = vst [vmem:[%s288 + $0x8] sm:$0xf] %v293
                  %v295 = vld [vmem:[%s287 + $0x18] sm:$0xf]
                  %296 = vst [vmem:[%s288 + $0xc] sm:$0xf] %v295
                  %v297 = vld [vmem:[%s287 + $0x20] sm:$0xf]
                  %298 = vst [vmem:[%s288 + $0x10] sm:$0xf] %v297
                  %v299 = vld [vmem:[%s287 + $0x28] sm:$0xf]
                  %300 = vst [vmem:[%s288 + $0x14] sm:$0xf] %v299
                  %v301 = vld [vmem:[%s287 + $0x30] sm:$0xf]
                  %302 = vst [vmem:[%s288 + $0x18] sm:$0xf] %v301
                $region79: #{tpu_custom_call.1} parent=66 // loop_footer
                  %s286 = sadd.s32 1, %s282
                $region80: #{tpu_custom_call.1} parent=66 // loop_footer_branch
                  %281 = sbr.rel target = $region76
                $region81: #{tpu_custom_call.1} parent=66 // loop_exit
                  _
              $region67: #{tpu_custom_call.1} parent=51 // pred_fallthru
                _
            $region52: #{tpu_custom_call.1} parent=47 // pred_fallthru
              _
            // Predicated region
            $region53: #{tpu_custom_call.1} parent=47 // pred_check
              _
            $region54: #{tpu_custom_call.1} parent=47 // pred_check_branch
              %246 = sbr.rel (0) target = $region56
            $region55: #{tpu_custom_call.1} parent=47 // pred_region
              loop: start=0, step=1, limit=1
              $region57: #{tpu_custom_call.1} parent=55 // loop_pre_header
                _
              $region58: #{tpu_custom_call.1} parent=55 // loop_header
                %s249 = sphi 0, %s253
                %p250 = scmp.ge.s32.totalorder %s249, 1
                %s254 = sphi %s240, %s240
                %s255 = sphi %s238, %s238
              $region59: #{tpu_custom_call.1} parent=55 // loop_header_branch
                %252 = sbr.rel (%p250) target = $region63
              $region60: #{tpu_custom_call.1} parent=55 // loop_body
                %v256 = vld [vmem:[%s254] sm:$0xf]
                %257 = vst [vmem:[%s255] sm:$0xf] %v256
                %v258 = vld [vmem:[%s254 + $0x8] sm:$0xf]
                %259 = vst [vmem:[%s255 + $0x4] sm:$0xf] %v258
                %v260 = vld [vmem:[%s254 + $0x10] sm:$0xf]
                %261 = vst [vmem:[%s255 + $0x8] sm:$0xf] %v260
                %v262 = vld [vmem:[%s254 + $0x18] sm:$0xf]
                %263 = vst [vmem:[%s255 + $0xc] sm:$0xf] %v262
                %v264 = vld [vmem:[%s254 + $0x20] sm:$0xf]
                %265 = vst [vmem:[%s255 + $0x10] sm:$0xf] %v264
                %v266 = vld [vmem:[%s254 + $0x28] sm:$0xf]
                %267 = vst [vmem:[%s255 + $0x14] sm:$0xf] %v266
                %v268 = vld [vmem:[%s254 + $0x30] sm:$0xf]
                %269 = vst [vmem:[%s255 + $0x18] sm:$0xf] %v268
              $region61: #{tpu_custom_call.1} parent=55 // loop_footer
                %s253 = sadd.s32 1, %s249
              $region62: #{tpu_custom_call.1} parent=55 // loop_footer_branch
                %248 = sbr.rel target = $region58
              $region63: #{tpu_custom_call.1} parent=55 // loop_exit
                _
            $region56: #{tpu_custom_call.1} parent=47 // pred_fallthru
              _
          $region48: #{tpu_custom_call.1} parent=43 // pred_fallthru
            _
          %303 = vnop
        $region44: #{tpu_custom_call.1} parent=39 // pred_fallthru
          _
      $region40: #{tpu_custom_call.1} parent=5 // pred_fallthru
        _
      %p304 = scmp.le.s32.totalorder 1, %s17
      %p305 = scmp.lt.s32.totalorder %s17, 3
      %p306 = pnand %p304, %p305
      %p307 = pneg %p306
      // Predicated region
      $region82: #{tpu_custom_call.1} parent=5 // pred_check
        _
      $region83: #{tpu_custom_call.1} parent=5 // pred_check_branch
        %309 = sbr.rel (%p306) target = $region85
      $region84: #{tpu_custom_call.1} parent=5 // pred_region
        %s310 = ssub.s32 %s17, 1
        %s311 = sand.u32 %s51, 1
        %s312 = sand.u32 %s51, 1
        %s313 = smul.addr %s312, 28
        %s314 = scalar_lea.vmem [#allocation3], %s313
        // Predicated region
        $region86: #{tpu_custom_call.1} parent=84 // pred_check
          %p315 = pneg %p64
        $region87: #{tpu_custom_call.1} parent=84 // pred_check_branch
          %317 = sbr.rel (%p315) target = $region89
        $region88: #{tpu_custom_call.1} parent=84 // pred_region
          _
        $region89: #{tpu_custom_call.1} parent=84 // pred_fallthru
          _
        %p318 = pneg %p38
        %p319 = pneg %p35
        %s320 = sand.u32 %s51, 1
        %s321 = sand.u32 %s51, 1
        %s322 = smul.addr %s321, 28
        %s323 = scalar_lea.vmem [#allocation3], %s322
        %p324 = pneg %p64
        %p325 = pneg %p61
        %p326 = pneg %p85
        %p327 = pneg %p82
        %p328 = pneg %p106
        %p329 = pneg %p103
        %p330 = pneg %p127
        %p331 = pneg %p124
        %p332 = pneg %p148
        %p333 = pneg %p145
        %p334 = pneg %p169
        %p335 = pneg %p166
        %p336 = pneg %p195
        %p337 = pneg %p192
        %s338 = sand.u32 %s182, 1
        %s339 = scalar_lea.sflag [#allocation5], %s338
        %s340 = sand.u32 %s182, 1
        %s341 = scalar_lea.vmem [#allocation4], %s340
        %v343 = vld [vmem:[%s314] sm:$0xf]
        %v344 = vld [vmem:[%s314 + $0x4] sm:$0xf]
        %v345 = vld [vmem:[%s314 + $0x8] sm:$0xf]
        %v346 = vld [vmem:[%s314 + $0xc] sm:$0xf]
        %v347 = vld [vmem:[%s314 + $0x10] sm:$0xf]
        %v348 = vld [vmem:[%s314 + $0x14] sm:$0xf]
        %v349 = vld [vmem:[%s314 + $0x18] sm:$0x1]
        %v350 = vunpack.c.l.bf16 %v349
        %v351 = vunpack.c.l.bf16 %v343
        %v352 = vunpack.c.l.bf16 %v344
        %v353 = vunpack.c.l.bf16 %v345
        %v354 = vunpack.c.l.bf16 %v346
        %v355 = vunpack.c.l.bf16 %v347
        %v356 = vunpack.c.l.bf16 %v348
        %v357 = vmul.f32 %v351, %v353
        %v358 = vmul.f32 %v352, %v354
        %v359 = vmul.f32 %v351, %v355
        %v360 = vmul.f32 %v352, %v356
        %v361 = vadd.f32 %v357, %v359
        %v362 = vadd.f32 %v358, %v360
        %v363 = vmul.f32 %v353, %v355
        %v364 = vmul.f32 %v354, %v356
        %v365 = vadd.f32 %v361, %v363
        %v366 = vadd.f32 %v362, %v364
        %v367 = vadd.f32 %v365, %v366
        %v368 = vrot.slane %v367, 4
        %v369 = vadd.f32 %v367, %v368
        %v370 = vrot.slane %v369, 2
        %v371 = vadd.f32 %v369, %v370
        %v372 = vrot.slane %v371, 1
        %v373 = vadd.f32 %v371, %v372
        %v374 = vld [vmem:[%s2] sm:$0xf]
        %v375 = vld [vmem:[%s2 + $0x4] sm:$0xf]
        %v376 = vld [vmem:[%s2 + $0x8] sm:$0xf]
        %v377 = vld [vmem:[%s2 + $0xc] sm:$0xf]
        %v378 = vld [vmem:[%s2 + $0x10] sm:$0xf]
        %v379 = vld [vmem:[%s2 + $0x14] sm:$0xf]
        %v380 = vld [vmem:[%s2 + $0x18] sm:$0xf]
        %v381 = vld [vmem:[%s2 + $0x1c] sm:$0xf]
        %v382 = vld [vmem:[%s3] sm:$0xff]
        %v383 = vld [vmem:[%s3 + $0x8] sm:$0xff]
        %v384 = vld [vmem:[%s3 + $0x10] sm:$0xff]
        %v385 = vld [vmem:[%s3 + $0x18] sm:$0xff]
        %v386 = vld [vmem:[%s3 + $0x20] sm:$0xff]
        %v387 = vld [vmem:[%s3 + $0x28] sm:$0xff]
        %v388 = vld [vmem:[%s3 + $0x30] sm:$0xff]
        %v389 = vld [vmem:[%s3 + $0x38] sm:$0xff]
        %391 = vset.pattern.permute.xlu0 0
        %392 = vperm.xlu0 %391, %v382
        %v393 = vpop.permute.xlu0 %392
        %396 = vset.pattern.permute.xlu0 0
        %397 = vperm.xlu0 %396, %v383
        %v398 = vpop.permute.xlu0 %397
        %401 = vset.pattern.permute.xlu0 0
        %402 = vperm.xlu0 %401, %v384
        %v403 = vpop.permute.xlu0 %402
        %406 = vset.pattern.permute.xlu0 0
        %407 = vperm.xlu0 %406, %v385
        %v408 = vpop.permute.xlu0 %407
        %411 = vset.pattern.permute.xlu0 0
        %412 = vperm.xlu0 %411, %v386
        %v413 = vpop.permute.xlu0 %412
        %416 = vset.pattern.permute.xlu0 0
        %417 = vperm.xlu0 %416, %v387
        %v418 = vpop.permute.xlu0 %417
        %421 = vset.pattern.permute.xlu0 0
        %422 = vperm.xlu0 %421, %v388
        %v423 = vpop.permute.xlu0 %422
        %426 = vset.pattern.permute.xlu0 0
        %427 = vperm.xlu0 %426, %v389
        %v428 = vpop.permute.xlu0 %427
        %v438 = vunpack.c.l.b16 %v374
        %v439 = vunpack.c.l.b16 %v375
        %v440 = vunpack.c.l.b16 %v376
        %v441 = vunpack.c.l.b16 %v377
        %v442 = vunpack.c.l.b16 %v378
        %v443 = vunpack.c.l.b16 %v379
        %v444 = vunpack.c.l.b16 %v380
        %v445 = vunpack.c.l.b16 %v381
        %v446 = vpack.c.b16 %v439, %v438
        %v447 = vpack.c.b16 %v441, %v440
        %v448 = vpack.c.b16 %v443, %v442
        %v449 = vpack.c.b16 %v445, %v444
        %v456 = vunpack.c.l.b16 %v343
        %v457 = vunpack.c.l.b16 %v344
        %v458 = vunpack.c.l.b16 %v345
        %v459 = vunpack.c.l.b16 %v346
        %v460 = vunpack.c.l.b16 %v347
        %v461 = vunpack.c.l.b16 %v348
        %v462 = vpack.c.b16 %v457, %v456
        %v463 = vpack.c.b16 %v459, %v458
        %v464 = vpack.c.b16 %v461, %v460
        %vm468 = vcmask 392192
        %v470 = vsel %vm468, %v446, 0
        %v473 = vsel %vm468, %v447, 0
        %v476 = vsel %vm468, %v448, 0
        %v479 = vsel %vm468, %v449, 0
        %481 = vmatprep.subr.bf16.mxu0 0
        %482 = vmatpush1.bf16.msra.mxu0 %v462
        %483 = vmatprep.subr.bf16.mxu0 0
        %484 = vmatpush1.bf16.msra.mxu0 %v463
        %485 = vmatprep.subr.bf16.mxu0 0
        %486 = vmatpush1.bf16.msra.mxu0 %v464
        %487 = vmatprep.subr.bf16.mxu0 0
        %488 = vmatpush1.bf16.msra.mxu0 0
        %489 = vmatprep.subr.bf16.mxu0 0
        %490 = vmatpush1.bf16.msra.mxu0 0
        %491 = vmatprep.subr.bf16.mxu0 0
        %492 = vmatpush1.bf16.msra.mxu0 0
        %493 = vmatprep.subr.bf16.mxu0 0
        %494 = vmatpush1.bf16.msra.mxu0 0
        %495 = vmatprep.subr.bf16.mxu0 0
        %496 = vmatpush1.bf16.msra.mxu0 0
        %497 = vmatprep.subr.bf16.mxu0 0
        %498 = vmatpush1.bf16.msra.mxu0 0
        %499 = vmatprep.subr.bf16.mxu0 0
        %500 = vmatpush1.bf16.msra.mxu0 0
        %501 = vmatprep.subr.bf16.mxu0 0
        %502 = vmatpush1.bf16.msra.mxu0 0
        %503 = vmatprep.subr.bf16.mxu0 0
        %504 = vmatpush1.bf16.msra.mxu0 0
        %505 = vmatprep.subr.bf16.mxu0 0
        %506 = vmatpush1.bf16.msra.mxu0 0
        %507 = vmatprep.subr.bf16.mxu0 0
        %508 = vmatpush1.bf16.msra.mxu0 0
        %509 = vmatprep.subr.bf16.mxu0 0
        %510 = vmatpush1.bf16.msra.mxu0 0
        %511 = vmatprep.subr.bf16.mxu0 0
        %512 = vmatpush1.bf16.msra.mxu0 0
        %513 = vmatprep.mubr.bf16.mxu0 0
        %514 = vmatmul.mubr.bf16.gmra.mrb[0].mxu0 %v470
        %v515 = vpop.f32.mrb[0].mxu0
        %v516 = vadd.f32 %v393, %v515
        %v517 = vpop.f32.mrb[0].mxu0
        %v518 = vpop.f32.mrb[0].mxu0
        %v519 = vadd.f32 %v398, %v518
        %v520 = vpop.f32.mrb[0].mxu0
        %521 = vmatprep.mubr.bf16.mxu0 0
        %522 = vmatmul.mubr.bf16.gmra.mrb[0].mxu0 %v473
        %v523 = vpop.f32.mrb[0].mxu0
        %v524 = vadd.f32 %v403, %v523
        %v525 = vpop.f32.mrb[0].mxu0
        %v526 = vpop.f32.mrb[0].mxu0
        %v527 = vadd.f32 %v408, %v526
        %v528 = vpop.f32.mrb[0].mxu0
        %529 = vmatprep.mubr.bf16.mxu0 0
        %530 = vmatmul.mubr.bf16.gmra.mrb[0].mxu0 %v476
        %v531 = vpop.f32.mrb[0].mxu0
        %v532 = vadd.f32 %v413, %v531
        %v533 = vpop.f32.mrb[0].mxu0
        %v534 = vpop.f32.mrb[0].mxu0
        %v535 = vadd.f32 %v418, %v534
        %v536 = vpop.f32.mrb[0].mxu0
        %537 = vmatprep.mubr.bf16.mxu0 0
        %538 = vmatmul.mubr.bf16.gmra.mrb[0].mxu0 %v479
        %v539 = vpop.f32.mrb[0].mxu0
        %v540 = vadd.f32 %v423, %v539
        %v541 = vpop.f32.mrb[0].mxu0
        %v542 = vpop.f32.mrb[0].mxu0
        %v543 = vadd.f32 %v428, %v542
        %v544 = vpop.f32.mrb[0].mxu0
        %545 = vdwg.mxu0
        %v546 = vmax.f32 %v516, 0.0
        %v547 = vmax.f32 %v519, 0.0
        %v548 = vmax.f32 %v524, 0.0
        %v549 = vmax.f32 %v527, 0.0
        %v550 = vmax.f32 %v532, 0.0
        %v551 = vmax.f32 %v535, 0.0
        %v552 = vmax.f32 %v540, 0.0
        %v553 = vmax.f32 %v543, 0.0
        %v554 = vld [vmem:[%s4] sm:$0xff]
        %v555 = vld [vmem:[%s4 + $0x8] sm:$0xff]
        %v556 = vld [vmem:[%s4 + $0x10] sm:$0xff]
        %v557 = vld [vmem:[%s4 + $0x18] sm:$0xff]
        %v558 = vld [vmem:[%s5] sm:$0xff]
        %v559 = vld [vmem:[%s5 + $0x8] sm:$0xff]
        %v560 = vld [vmem:[%s5 + $0x10] sm:$0xff]
        %v561 = vld [vmem:[%s5 + $0x18] sm:$0xff]
        %563 = vset.pattern.permute.xlu0 0
        %564 = vperm.xlu0 %563, %v558
        %v565 = vpop.permute.xlu0 %564
        %568 = vset.pattern.permute.xlu0 0
        %569 = vperm.xlu0 %568, %v559
        %v570 = vpop.permute.xlu0 %569
        %573 = vset.pattern.permute.xlu0 0
        %574 = vperm.xlu0 %573, %v560
        %v575 = vpop.permute.xlu0 %574
        %578 = vset.pattern.permute.xlu0 0
        %579 = vperm.xlu0 %578, %v561
        %v580 = vpop.permute.xlu0 %579
        %vm582 = vcmask 523264
        %v584 = vsel %vm582, %v554, 0
        %v587 = vsel %vm582, %v555, 0
        %v590 = vsel %vm582, %v556, 0
        %v593 = vsel %vm582, %v557, 0
        %595 = vmatprep.subr.mxu0 0.0
        %596 = vmatpush1.msra.mxu0 %v546
        %597 = vmatprep.subr.mxu0 0.0
        %598 = vmatpush1.msra.mxu0 %v547
        %599 = vmatprep.subr.mxu0 0.0
        %600 = vmatpush1.msra.mxu0 %v548
        %601 = vmatprep.subr.mxu0 0.0
        %602 = vmatpush1.msra.mxu0 %v549
        %603 = vmatprep.subr.mxu0 0.0
        %604 = vmatpush1.msra.mxu0 %v550
        %605 = vmatprep.subr.mxu0 0.0
        %606 = vmatpush1.msra.mxu0 %v551
        %607 = vmatprep.subr.mxu0 0.0
        %608 = vmatpush1.msra.mxu0 %v552
        %609 = vmatprep.subr.mxu0 0.0
        %610 = vmatpush1.msra.mxu0 %v553
        %611 = vmatprep.subr.mxu0 0.0
        %612 = vmatpush1.msra.mxu0 0.0
        %613 = vmatprep.subr.mxu0 0.0
        %614 = vmatpush1.msra.mxu0 0.0
        %615 = vmatprep.subr.mxu0 0.0
        %616 = vmatpush1.msra.mxu0 0.0
        %617 = vmatprep.subr.mxu0 0.0
        %618 = vmatpush1.msra.mxu0 0.0
        %619 = vmatprep.subr.mxu0 0.0
        %620 = vmatpush1.msra.mxu0 0.0
        %621 = vmatprep.subr.mxu0 0.0
        %622 = vmatpush1.msra.mxu0 0.0
        %623 = vmatprep.subr.mxu0 0.0
        %624 = vmatpush1.msra.mxu0 0.0
        %625 = vmatprep.subr.mxu0 0.0
        %626 = vmatpush1.msra.mxu0 0.0
        %627 = vmatprep.subr.mxu0 0.0
        %628 = vmatpush1.msra.mxu0 0.0
        %629 = vmatprep.subr.mxu0 0.0
        %630 = vmatpush1.msra.mxu0 0.0
        %631 = vmatprep.subr.mxu0 0.0
        %632 = vmatpush1.msra.mxu0 0.0
        %633 = vmatprep.subr.mxu0 0.0
        %634 = vmatpush1.msra.mxu0 0.0
        %635 = vmatprep.subr.mxu0 0.0
        %636 = vmatpush1.msra.mxu0 0.0
        %637 = vmatprep.subr.mxu0 0.0
        %638 = vmatpush1.msra.mxu0 0.0
        %639 = vmatprep.subr.mxu0 0.0
        %640 = vmatpush1.msra.mxu0 0.0
        %641 = vmatprep.subr.mxu0 0.0
        %642 = vmatpush1.msra.mxu0 0.0
        %643 = vmatprep.subr.mxu0 0.0
        %644 = vmatpush1.msra.mxu0 0.0
        %645 = vmatprep.subr.mxu0 0.0
        %646 = vmatpush1.msra.mxu0 0.0
        %647 = vmatprep.subr.mxu0 0.0
        %648 = vmatpush1.msra.mxu0 0.0
        %649 = vmatprep.subr.mxu0 0.0
        %650 = vmatpush1.msra.mxu0 0.0
        %651 = vmatprep.subr.mxu0 0.0
        %652 = vmatpush1.msra.mxu0 0.0
        %653 = vmatprep.subr.mxu0 0.0
        %654 = vmatpush1.msra.mxu0 0.0
        %655 = vmatprep.subr.mxu0 0.0
        %656 = vmatpush1.msra.mxu0 0.0
        %657 = vmatprep.subr.mxu0 0.0
        %658 = vmatpush1.msra.mxu0 0.0
        %659 = vmatprep.mubr.f32.mxu0 0.0
        %660 = vmatmul.mubr.f32.gmra.mrb[0].mxu0 %v584
        %v661 = vpop.f32.mrb[0].mxu0
        %v662 = vadd.f32 %v565, %v661
        %v663 = vpop.f32.mrb[0].mxu0
        %664 = vmatprep.mubr.f32.mxu0 0.0
        %665 = vmatmul.mubr.f32.gmra.mrb[0].mxu0 %v587
        %v666 = vpop.f32.mrb[0].mxu0
        %v667 = vadd.f32 %v570, %v666
        %v668 = vpop.f32.mrb[0].mxu0
        %669 = vmatprep.mubr.f32.mxu0 0.0
        %670 = vmatmul.mubr.f32.gmra.mrb[0].mxu0 %v590
        %v671 = vpop.f32.mrb[0].mxu0
        %v672 = vadd.f32 %v575, %v671
        %v673 = vpop.f32.mrb[0].mxu0
        %674 = vmatprep.mubr.f32.mxu0 0.0
        %675 = vmatmul.mubr.f32.gmra.mrb[0].mxu0 %v593
        %v676 = vpop.f32.mrb[0].mxu0
        %v677 = vadd.f32 %v580, %v676
        %v678 = vpop.f32.mrb[0].mxu0
        %679 = vdwg.mxu0
        %v680 = vmax.f32 %v662, 0.0
        %v681 = vmax.f32 %v667, 0.0
        %v682 = vmax.f32 %v672, 0.0
        %v683 = vmax.f32 %v677, 0.0
        %v684 = vld [vmem:[%s6] sm:$0xff]
        %v685 = vld [vmem:[%s6 + $0x8] sm:$0xff]
        %v686 = vld [vmem:[%s6 + $0x10] sm:$0xff]
        %v687 = vld [vmem:[%s6 + $0x18] sm:$0xff]
        %689 = vset.pattern.permute.xlu0 0
        %690 = vperm.xlu0 %689, %v684
        %v691 = vpop.permute.xlu0 %690
        %694 = vset.pattern.permute.xlu0 0
        %695 = vperm.xlu0 %694, %v685
        %v696 = vpop.permute.xlu0 %695
        %699 = vset.pattern.permute.xlu0 0
        %700 = vperm.xlu0 %699, %v686
        %v701 = vpop.permute.xlu0 %700
        %704 = vset.pattern.permute.xlu0 0
        %705 = vperm.xlu0 %704, %v687
        %v706 = vpop.permute.xlu0 %705
        %v708 = vmul.f32 %v680, %v691
        %v709 = vmul.f32 %v681, %v696
        %v710 = vmul.f32 %v682, %v701
        %v711 = vmul.f32 %v683, %v706
        %v712 = vadd.f32 %v708, %v709
        %v713 = vadd.f32 %v712, %v710
        %v714 = vadd.f32 %v713, %v711
        %v715 = vrot.slane %v714, 4
        %v716 = vadd.f32 %v714, %v715
        %v717 = vrot.slane %v716, 2
        %v718 = vadd.f32 %v716, %v717
        %v719 = vrot.slane %v718, 1
        %v720 = vadd.f32 %v718, %v719
        %s721 = sld [smem:[#allocation2]]
        %v722 = vstv %s721
        %v723 = vadd.f32 %v722, %v373
        %v724 = vadd.f32 %v723, %v720
        %v725 = vadd.f32 %v724, %v350
        %726 = vst [vmem:[%s341] sm:$0x1] %v725
        %s727 = sand.u32 %s182, 1
        %s728 = scalar_lea.sflag [#allocation5], %s727
        %s729 = sand.u32 %s182, 1
        %s730 = scalar_lea.vmem [#allocation4], %s729
        // Predicated region
        $region90: #{tpu_custom_call.1} parent=84 // pred_check
          %p731 = pneg %p192
        $region91: #{tpu_custom_call.1} parent=84 // pred_check_branch
          %733 = sbr.rel (%p731) target = $region93
        $region92: #{tpu_custom_call.1} parent=84 // pred_region
          %s735 = ssub.s32 16, 16
          %736 = vsyncadd %s728, %s735
          %s737 = smul.addr %s22, 16
          %s738 = scalar_lea.hbm %s7, %s737
          %s740 = sshll.u32 %s730, 4
          %s741 = int_to_ptr.vmem [resolvable:$true] %s740
          %743 = dma.vmem_to_hbm [thread:$0]  %s741, 16, %s738, %s728
        $region93: #{tpu_custom_call.1} parent=84 // pred_fallthru
          _
      $region85: #{tpu_custom_call.1} parent=5 // pred_fallthru
        _
      %p744 = scmp.le.s32.totalorder 2, %s17
      // Predicated region
      $region94: #{tpu_custom_call.1} parent=5 // pred_check
        %p745 = pneg %p744
      $region95: #{tpu_custom_call.1} parent=5 // pred_check_branch
        %747 = sbr.rel (%p745) target = $region97
      $region96: #{tpu_custom_call.1} parent=5 // pred_region
        %s748 = ssub.s32 %s17, 2
        // Predicated region
        $region98: #{tpu_custom_call.1} parent=96 // pred_check
          %p749 = pneg %p198
        $region99: #{tpu_custom_call.1} parent=96 // pred_check_branch
          %751 = sbr.rel (%p749) target = $region101
        $region100: #{tpu_custom_call.1} parent=96 // pred_region
          %s752 = sand.u32 %s183, 1
          %s753 = scalar_lea.sflag [#allocation5], %s752
          %s754 = sand.u32 %s183, 1
          %s755 = scalar_lea.vmem [#allocation4], %s754
          %756 = dma.done %s753, 16
        $region101: #{tpu_custom_call.1} parent=96 // pred_fallthru
          _
      $region97: #{tpu_custom_call.1} parent=5 // pred_fallthru
        _
    $region6: #{tpu_custom_call.1} parent=1 // loop_footer
      %s21 = sadd.s32 1, %s17
    $region7: #{tpu_custom_call.1} parent=1 // loop_footer_branch
      %16 = sbr.rel target = $region3
    $region8: #{tpu_custom_call.1} parent=1 // loop_exit
      _
    %757 = vsyncpa [#allocation5], 1
    %s758 = scalar_lea.sflag [#allocation5], 1
    %759 = vsyncpa %s758, 1

</llo_original>
